<compile_context>
chip_gen: v6e
topology: v6e:2x2x1
jax: 0.10.0
libtpu: 0.0.40
codegen_flags: <defaults>
</compile_context>

<pallas_src>
import jax
import jax.numpy as jnp
from jax.experimental import pallas as pl
from jax.experimental.pallas import tpu as pltpu


def _make_mlp_kernel(num_linears):
    """Kernel: elementwise product -> (Linear+ReLU)*(L-1) -> Linear -> sigmoid."""

    def kernel(*refs):
        xi_ref, xj_ref = refs[0], refs[1]
        out_ref = refs[-1]
        wb_refs = refs[2:-1]  # w0, b0, w1, b1, ..., interleaved (block-diagonal form)

        # Elementwise product on lane-dense rows; keep VPU math in f32 (v5e note).
        x = xi_ref[...] * xj_ref[...]
        for l in range(num_linears):
            w = wb_refs[2 * l][...]
            b = wb_refs[2 * l + 1][...]
            # MXU matmul with f32 accumulation; block-diagonal zeros add exact 0s,
            # so results match the un-packed computation bit-for-bit.
            x = jnp.dot(x, w, preferred_element_type=jnp.float32) + b
            if l < num_linears - 1:
                x = jnp.maximum(x, 0.0)
                # TODO(synk): F.dropout is identity in eval mode (training=False);
                # training-mode dropout would use pltpu.prng_seed + pltpu.stateful_bernoulli.
        out_ref[...] = jax.nn.sigmoid(x).astype(out_ref.dtype)

    return kernel


def _block_diag(w, pack):
    """[Cin, Cout] -> block-diagonal [pack*Cin, pack*Cout]; built once, outside the kernel."""
    cin, cout = w.shape
    wbd = jnp.zeros((pack * cin, pack * cout), w.dtype)
    for g in range(pack):
        wbd = wbd.at[g * cin:(g + 1) * cin, g * cout:(g + 1) * cout].set(w)
    return wbd


def _choose_tile_rows(num_rows, max_rows):
    """Largest multiple-of-8 row tile <= max_rows, but keep >=2 grid steps when the
    batch allows it so the 'parallel' axis can shard across v7x's two TensorCores."""
    tile = min(max_rows, num_rows)
    if tile == num_rows and num_rows >= 16:
        tile = max(8, (num_rows // 2) // 8 * 8)
    return tile


def delay_predictor_forward(x_i, x_j, params, *, pack=8, max_tile_rows=2048):
    """params: list of (W[Cin, Cout], b[1, Cout]) per linear layer."""
    N, cin = x_i.shape
    num_linears = len(params)
    cout = params[-1][0].shape[1]

    # Pad the batch so it splits into whole (pack * 8)-example groups (8 = sublanes).
    # Padded rows produce garbage outputs that are sliced off below (no cross-row
    # reductions exist in this model, so this is safe).
    n_pad = -N % (pack * 8)
    if n_pad:
        x_i = jnp.pad(x_i, ((0, n_pad), (0, 0)))
        x_j = jnp.pad(x_j, ((0, n_pad), (0, 0)))
    n_total = N + n_pad
    rows = n_total // pack

    # Lane-dense packing: pure row-major reshapes, free at the call boundary.
    xi_p = x_i.reshape(rows, pack * cin)
    xj_p = x_j.reshape(rows, pack * cin)

    # Expand weights/biases so packed rows need no in-kernel relayout (tiny, one-time).
    packed_params = [(_block_diag(w, pack), jnp.tile(b, (1, pack))) for w, b in params]

    tile_rows = _choose_tile_rows(rows, max_tile_rows)
    grid = (pl.cdiv(rows, tile_rows),)

    act_spec = pl.BlockSpec((tile_rows, pack * cin), lambda i: (i, 0))
    out_spec = pl.BlockSpec((tile_rows, pack * cout), lambda i: (i, 0))

    in_specs = [act_spec, act_spec]
    flat_params = []
    for w, b in packed_params:
        # Grid-invariant whole-array blocks: constant index_map -> DMA'd once, reused.
        in_specs.append(pl.BlockSpec(w.shape, lambda i: (0, 0)))
        in_specs.append(pl.BlockSpec(b.shape, lambda i: (0, 0)))
        flat_params += [w, b]

    kernel = _make_mlp_kernel(num_linears)

    out_packed = pl.pallas_call(
        kernel,
        out_shape=jax.ShapeDtypeStruct((rows, pack * cout), jnp.float32),
        grid_spec=pl.GridSpec(
            grid=grid,
            in_specs=in_specs,
            out_specs=out_spec,
        ),
        compiler_params=pltpu.CompilerParams(
            dimension_semantics=("parallel",),
            vmem_limit_bytes=32 * 1024 * 1024,
        ),
    )(xi_p, xj_p, *flat_params)

    # Un-pack (row-major reshape) and drop padded rows.
    return out_packed.reshape(n_total, cout)[:N]


def init_params(key, in_channels, hidden_channels, out_channels, num_layers):
    """Deterministic init mimicking torch.nn.Linear.reset_parameters (uniform +/- 1/sqrt(fan_in))."""
    dims = [in_channels] + [hidden_channels] * (num_layers - 1) + [out_channels]
    params = []
    for l in range(num_layers):
        fan_in, fan_out = dims[l], dims[l + 1]
        key, kw, kb = jax.random.split(key, 3)
        bound = 1.0 / jnp.sqrt(fan_in)
        w = jax.random.uniform(kw, (fan_in, fan_out), jnp.float32, -bound, bound)
        b = jax.random.uniform(kb, (1, fan_out), jnp.float32, -bound, bound)
        params.append((w, b))
    return params


def reference_forward(x_i, x_j, params):
    x = x_i * x_j
    for w, b in params[:-1]:
        x = jnp.maximum(x @ w + b, 0.0)
    w, b = params[-1]
    return jax.nn.sigmoid(x @ w + b)


if __name__ == "__main__":
    # Small shapes consistent with the module's forward.
    batch = 128
    in_channels = 16
    hidden_channels = 32
    out_channels = 8
    num_layers = 3
    dropout = 0.5  # inactive: eval-mode forward

    key = jax.random.PRNGKey(0)
    k_xi, k_xj, k_p = jax.random.split(key, 3)
    x_i = jax.random.normal(k_xi, (batch, in_channels), jnp.float32)
    x_j = jax.random.normal(k_xj, (batch, in_channels), jnp.float32)
    params = init_params(k_p, in_channels, hidden_channels, out_channels, num_layers)

    out = delay_predictor_forward(x_i, x_j, params)
    out = jax.block_until_ready(out)

    ref = reference_forward(x_i, x_j, params)
    assert out.shape == (batch, out_channels)
    assert jnp.allclose(out, ref, atol=1e-5, rtol=1e-5)

    print("KERNEL_OK")
</pallas_src>

<mosaic_0001>
module attributes {stable_mosaic.version = 11 : i64} {
  func.func @kernel(%arg0: i32, %arg1: memref<8x128xf32, #tpu.memory_space<vmem>>, %arg2: memref<8x128xf32, #tpu.memory_space<vmem>>, %arg3: memref<128x256xf32, #tpu.memory_space<vmem>>, %arg4: memref<1x256xf32, #tpu.memory_space<vmem>>, %arg5: memref<256x256xf32, #tpu.memory_space<vmem>>, %arg6: memref<1x256xf32, #tpu.memory_space<vmem>>, %arg7: memref<256x64xf32, #tpu.memory_space<vmem>>, %arg8: memref<1x64xf32, #tpu.memory_space<vmem>>, %arg9: memref<8x64xf32, #tpu.memory_space<vmem>>) attributes {dimension_semantics = [#tpu.dimension_semantics<parallel>], iteration_bounds = array<i64: 2>, scalar_prefetch = 0 : i64, scratch_operands = 0 : i64, tpu.core_type = #tpu.core_type<tc>, window_params = [{transform_indices = @transform_0, window_bounds = array<i64: 8, 128>}, {transform_indices = @transform_1, window_bounds = array<i64: 8, 128>}, {pipeline_mode = #tpu.pipeline_mode<synchronous>, transform_indices = @transform_2, window_bounds = array<i64: 128, 256>}, {pipeline_mode = #tpu.pipeline_mode<synchronous>, transform_indices = @transform_3, window_bounds = array<i64: 1, 256>}, {pipeline_mode = #tpu.pipeline_mode<synchronous>, transform_indices = @transform_4, window_bounds = array<i64: 256, 256>}, {pipeline_mode = #tpu.pipeline_mode<synchronous>, transform_indices = @transform_5, window_bounds = array<i64: 1, 256>}, {pipeline_mode = #tpu.pipeline_mode<synchronous>, transform_indices = @transform_6, window_bounds = array<i64: 256, 64>}, {pipeline_mode = #tpu.pipeline_mode<synchronous>, transform_indices = @transform_7, window_bounds = array<i64: 1, 64>}, {transform_indices = @transform_8, window_bounds = array<i64: 8, 64>}]} {
    %c0 = arith.constant 0 : index
    %c0_0 = arith.constant 0 : index
    %0 = vector.load %arg1[%c0, %c0_0] : memref<8x128xf32, #tpu.memory_space<vmem>>, vector<8x128xf32>
    %c0_1 = arith.constant 0 : index
    %c0_2 = arith.constant 0 : index
    %1 = vector.load %arg2[%c0_1, %c0_2] : memref<8x128xf32, #tpu.memory_space<vmem>>, vector<8x128xf32>
    %2 = arith.mulf %0, %1 : vector<8x128xf32>
    %c0_3 = arith.constant 0 : index
    %c0_4 = arith.constant 0 : index
    %3 = vector.load %arg3[%c0_3, %c0_4] : memref<128x256xf32, #tpu.memory_space<vmem>>, vector<128x256xf32>
    %c0_5 = arith.constant 0 : index
    %c0_6 = arith.constant 0 : index
    %4 = vector.load %arg4[%c0_5, %c0_6] : memref<1x256xf32, #tpu.memory_space<vmem>>, vector<1x256xf32>
    %cst = arith.constant dense<0.000000e+00> : vector<8x256xf32>
    %5 = tpu.matmul %2, %3, %cst {dimension_numbers = #tpu.dot_dimension_numbers<[1], [0], [0], [1], [0, 0, 1, 1], [], []>} : vector<8x128xf32>, vector<128x256xf32>, vector<8x256xf32> -> vector<8x256xf32>
    %6 = vector.broadcast %4 : vector<1x256xf32> to vector<8x256xf32>
    %7 = arith.addf %5, %6 : vector<8x256xf32>
    %cst_7 = arith.constant 0.000000e+00 : f32
    %8 = vector.broadcast %cst_7 : f32 to vector<8x256xf32>
    %9 = arith.maximumf %7, %8 : vector<8x256xf32>
    %c0_8 = arith.constant 0 : index
    %c0_9 = arith.constant 0 : index
    %10 = vector.load %arg5[%c0_8, %c0_9] : memref<256x256xf32, #tpu.memory_space<vmem>>, vector<256x256xf32>
    %c0_10 = arith.constant 0 : index
    %c0_11 = arith.constant 0 : index
    %11 = vector.load %arg6[%c0_10, %c0_11] : memref<1x256xf32, #tpu.memory_space<vmem>>, vector<1x256xf32>
    %cst_12 = arith.constant dense<0.000000e+00> : vector<8x256xf32>
    %12 = tpu.matmul %9, %10, %cst_12 {dimension_numbers = #tpu.dot_dimension_numbers<[1], [0], [0], [1], [0, 0, 1, 1], [], []>} : vector<8x256xf32>, vector<256x256xf32>, vector<8x256xf32> -> vector<8x256xf32>
    %13 = vector.broadcast %11 : vector<1x256xf32> to vector<8x256xf32>
    %14 = arith.addf %12, %13 : vector<8x256xf32>
    %cst_13 = arith.constant 0.000000e+00 : f32
    %15 = vector.broadcast %cst_13 : f32 to vector<8x256xf32>
    %16 = arith.maximumf %14, %15 : vector<8x256xf32>
    %c0_14 = arith.constant 0 : index
    %c0_15 = arith.constant 0 : index
    %17 = vector.load %arg7[%c0_14, %c0_15] : memref<256x64xf32, #tpu.memory_space<vmem>>, vector<256x64xf32>
    %c0_16 = arith.constant 0 : index
    %c0_17 = arith.constant 0 : index
    %18 = vector.load %arg8[%c0_16, %c0_17] : memref<1x64xf32, #tpu.memory_space<vmem>>, vector<1x64xf32>
    %cst_18 = arith.constant dense<0.000000e+00> : vector<8x64xf32>
    %19 = tpu.matmul %16, %17, %cst_18 {dimension_numbers = #tpu.dot_dimension_numbers<[1], [0], [0], [1], [0, 0, 1, 1], [], []>} : vector<8x256xf32>, vector<256x64xf32>, vector<8x64xf32> -> vector<8x64xf32>
    %20 = vector.broadcast %18 : vector<1x64xf32> to vector<8x64xf32>
    %21 = arith.addf %19, %20 : vector<8x64xf32>
    %22 = arith.negf %21 : vector<8x64xf32>
    %23 = math.exp %22 : vector<8x64xf32>
    %cst_19 = arith.constant 1.000000e+00 : f32
    %24 = vector.broadcast %cst_19 : f32 to vector<8x64xf32>
    %25 = arith.addf %24, %23 : vector<8x64xf32>
    %26 = arith.divf %24, %25 : vector<8x64xf32>
    %c0_20 = arith.constant 0 : index
    %c0_21 = arith.constant 0 : index
    %27 = vector.load %arg9[%c0_20, %c0_21] : memref<8x64xf32, #tpu.memory_space<vmem>>, vector<8x64xf32>
    tpu.vector_store %arg9[%c0_20, %c0_21], %26 {strides = array<i32>} : memref<8x64xf32, #tpu.memory_space<vmem>>, vector<8x64xf32>,
    return
  }
  func.func @transform_0(%arg0: i32) -> (i32, i32) {
    %c0_i32 = arith.constant 0 : i32
    %c0_i32_0 = arith.constant 0 : i32
    return %arg0, %c0_i32 : i32, i32
  }
  func.func @transform_1(%arg0: i32) -> (i32, i32) {
    %c0_i32 = arith.constant 0 : i32
    %c0_i32_0 = arith.constant 0 : i32
    return %arg0, %c0_i32 : i32, i32
  }
  func.func @transform_2(%arg0: i32) -> (i32, i32) {
    %c0_i32 = arith.constant 0 : i32
    %c0_i32_0 = arith.constant 0 : i32
    %c0_i32_1 = arith.constant 0 : i32
    return %c0_i32, %c0_i32_0 : i32, i32
  }
  func.func @transform_3(%arg0: i32) -> (i32, i32) {
    %c0_i32 = arith.constant 0 : i32
    %c0_i32_0 = arith.constant 0 : i32
    %c0_i32_1 = arith.constant 0 : i32
    return %c0_i32, %c0_i32_0 : i32, i32
  }
  func.func @transform_4(%arg0: i32) -> (i32, i32) {
    %c0_i32 = arith.constant 0 : i32
    %c0_i32_0 = arith.constant 0 : i32
    %c0_i32_1 = arith.constant 0 : i32
    return %c0_i32, %c0_i32_0 : i32, i32
  }
  func.func @transform_5(%arg0: i32) -> (i32, i32) {
    %c0_i32 = arith.constant 0 : i32
    %c0_i32_0 = arith.constant 0 : i32
    %c0_i32_1 = arith.constant 0 : i32
    return %c0_i32, %c0_i32_0 : i32, i32
  }
  func.func @transform_6(%arg0: i32) -> (i32, i32) {
    %c0_i32 = arith.constant 0 : i32
    %c0_i32_0 = arith.constant 0 : i32
    %c0_i32_1 = arith.constant 0 : i32
    return %c0_i32, %c0_i32_0 : i32, i32
  }
  func.func @transform_7(%arg0: i32) -> (i32, i32) {
    %c0_i32 = arith.constant 0 : i32
    %c0_i32_0 = arith.constant 0 : i32
    %c0_i32_1 = arith.constant 0 : i32
    return %c0_i32, %c0_i32_0 : i32, i32
  }
  func.func @transform_8(%arg0: i32) -> (i32, i32) {
    %c0_i32 = arith.constant 0 : i32
    %c0_i32_0 = arith.constant 0 : i32
    return %arg0, %c0_i32 : i32, i32
  }
}

</mosaic_0001>

<llo_original>
// kernel: tpu_custom_call.1
$region0: #{tpu_custom_call.1}
  #allocation0 [shape = 'u32[]', space=smem, size = 0x4, offset = 0x4, fixed_abs, tag = 'smem constant byte address 0x4 - core index']
  #allocation1 [shape = 'u32[144,128]{1,0:T(1,128)}', space=vmem, size = 0x12000, scoped, tag = 'internal scratch']
  %s0 = inlined_call_operand.vmem [shape: f32[16,128], index: 0, kind: input, shape index: {}]
  %s1 = inlined_call_operand.vmem [shape: f32[16,128], index: 1, kind: input, shape index: {}]
  %s2 = inlined_call_operand.vmem [shape: f32[128,256], index: 2, kind: input, shape index: {}]
  %s3 = inlined_call_operand.vmem [shape: f32[1,256], index: 3, kind: input, shape index: {}]
  %s4 = inlined_call_operand.hbm [shape: f32[256,256], index: 4, kind: input, shape index: {}]
  %s5 = inlined_call_operand.vmem [shape: f32[1,256], index: 5, kind: input, shape index: {}]
  %s6 = inlined_call_operand.vmem [shape: f32[256,64], index: 6, kind: input, shape index: {}]
  %s7 = inlined_call_operand.vmem [shape: f32[1,64], index: 7, kind: input, shape index: {}]
  %s8 = inlined_call_operand.hbm [shape: f32[16,64], index: 8, kind: output, shape index: {}]
  %s9 = sld [smem:[#allocation0]]
  $region69: #{tpu_custom_call.1} parent=0
    _
  %s11 = ssub.s32 1, %s9
  %s12 = scalar_select 0, %s11, %s9
  $region1: #{tpu_custom_call.1} parent=0
    #allocation2 [shape = 'u8[262144]{0}', space=vmem, size = 0x40000, scoped, tag = 'input window, operand 4, single buffered']
    #allocation3 [shape = 's32[2]{0}', space=sflag, size = 0x8, scoped, tag = 'scoped memory for tpu_custom_call.1']
    #allocation4 [shape = 's32[2]{0}', space=sflag, size = 0x8, scoped, tag = 'scoped memory for tpu_custom_call.1']
    #allocation5 [shape = 'u8[8192]{0}', space=vmem, size = 0x2000, scoped, tag = 'output window, operand 0']
    %13 = vsyncpa [#allocation3], 0
    %14 = vsyncpa [#allocation4], 0
    %s15 = scalar_lea.sflag [#allocation4], 1
    %16 = vsyncpa %s15, 0
    loop: start=0, step=1, limit=4
    $region2: #{tpu_custom_call.1} parent=1 // loop_pre_header
      _
    $region3: #{tpu_custom_call.1} parent=1 // loop_header
      %s18 = sphi 0, %s22
      %p19 = scmp.ge.s32.totalorder %s18, 4
      %s28 = sphi 0, %s30
      %s31 = sphi 0, %s28
      %s32 = sphi 0, %s31
      %s48 = sphi 0, %s32
      %s54 = sphi 0, %s56
      %s57 = sphi 0, %s54
      %s58 = sphi 0, %s57
      %s74 = sphi 0, %s58
      %s78 = sphi 0, %s78
      %s80 = sphi 0, %s78
      %s81 = sphi 0, %s80
      %s95 = sphi 0, %s81
      %s99 = sphi 0, %s99
      %s101 = sphi 0, %s99
      %s102 = sphi 0, %s101
      %s116 = sphi 0, %s102
      %s120 = sphi 0, %s120
      %s122 = sphi 0, %s120
      %s123 = sphi 0, %s122
      %s137 = sphi 0, %s123
      %s141 = sphi 0, %s141
      %s143 = sphi 0, %s141
      %s144 = sphi 0, %s143
      %s158 = sphi 0, %s144
      %s162 = sphi 0, %s162
      %s164 = sphi 0, %s162
      %s165 = sphi 0, %s164
      %s179 = sphi 0, %s165
      %s183 = sphi 0, %s183
      %s185 = sphi 0, %s183
      %s186 = sphi 0, %s185
      %s200 = sphi 0, %s186
      %s206 = sphi 0, %s208
      %s209 = sphi 0, %s206
      %s210 = sphi 0, %s209
      %s226 = sphi 0, %s210
    $region4: #{tpu_custom_call.1} parent=1 // loop_header_branch
      %21 = sbr.rel (%p19) target = $region8
    $region5: #{tpu_custom_call.1} parent=1 // loop_body
      %s23 = ssub.s32 %s18, 1
      %s24 = ssub.s32 %s18, 2
      %s25 = sadd.s32 %s18, 1
      %s26 = ssub.s32 %s18, %s25
      %p27 = scmp.eq.s32.totalorder %s26, 0
      %s29 = sadd.s32 %s28, 1
      %s30 = scalar_select %p27, %s28, %s29
      %p33 = pneg %p27
      %p34 = scmp.eq.s32.totalorder %s18, 1
      %p35 = por %p33, %p34
      %p36 = scmp.ne.s32.totalorder %s28, %s31
      %p37 = scmp.eq.s32.totalorder %s18, 0
      %p38 = por %p36, %p37
      %p39 = scmp.ne.s32.totalorder %s28, %s31
      %p40 = scmp.eq.s32.totalorder %s23, 1
      %p41 = por %p39, %p40
      %p42 = scmp.ne.s32.totalorder %s31, %s32
      %p43 = scmp.eq.s32.totalorder %s23, 0
      %p44 = por %p42, %p43
      %p45 = scmp.ne.s32.totalorder %s31, %s32
      %p46 = scmp.eq.s32.totalorder %s24, 1
      %p47 = por %p45, %p46
      %p49 = scmp.ne.s32.totalorder %s32, %s48
      %p50 = scmp.eq.s32.totalorder %s24, 0
      %p51 = por %p49, %p50
      %s52 = ssub.s32 %s18, %s25
      %p53 = scmp.eq.s32.totalorder %s52, 0
      %s55 = sadd.s32 %s54, 1
      %s56 = scalar_select %p53, %s54, %s55
      %p59 = pneg %p53
      %p60 = scmp.eq.s32.totalorder %s18, 1
      %p61 = por %p59, %p60
      %p62 = scmp.ne.s32.totalorder %s54, %s57
      %p63 = scmp.eq.s32.totalorder %s18, 0
      %p64 = por %p62, %p63
      %p65 = scmp.ne.s32.totalorder %s54, %s57
      %p66 = scmp.eq.s32.totalorder %s23, 1
      %p67 = por %p65, %p66
      %p68 = scmp.ne.s32.totalorder %s57, %s58
      %p69 = scmp.eq.s32.totalorder %s23, 0
      %p70 = por %p68, %p69
      %p71 = scmp.ne.s32.totalorder %s57, %s58
      %p72 = scmp.eq.s32.totalorder %s24, 1
      %p73 = por %p71, %p72
      %p75 = scmp.ne.s32.totalorder %s58, %s74
      %p76 = scmp.eq.s32.totalorder %s24, 0
      %p77 = por %p75, %p76
      %s79 = sadd.s32 %s78, 1
      %p82 = scmp.eq.s32.totalorder %s18, 1
      %p83 = scmp.ne.s32.totalorder %s78, %s80
      %p84 = scmp.eq.s32.totalorder %s18, 0
      %p85 = por %p83, %p84
      %p86 = scmp.ne.s32.totalorder %s78, %s80
      %p87 = scmp.eq.s32.totalorder %s23, 1
      %p88 = por %p86, %p87
      %p89 = scmp.ne.s32.totalorder %s80, %s81
      %p90 = scmp.eq.s32.totalorder %s23, 0
      %p91 = por %p89, %p90
      %p92 = scmp.ne.s32.totalorder %s80, %s81
      %p93 = scmp.eq.s32.totalorder %s24, 1
      %p94 = por %p92, %p93
      %p96 = scmp.ne.s32.totalorder %s81, %s95
      %p97 = scmp.eq.s32.totalorder %s24, 0
      %p98 = por %p96, %p97
      %s100 = sadd.s32 %s99, 1
      %p103 = scmp.eq.s32.totalorder %s18, 1
      %p104 = scmp.ne.s32.totalorder %s99, %s101
      %p105 = scmp.eq.s32.totalorder %s18, 0
      %p106 = por %p104, %p105
      %p107 = scmp.ne.s32.totalorder %s99, %s101
      %p108 = scmp.eq.s32.totalorder %s23, 1
      %p109 = por %p107, %p108
      %p110 = scmp.ne.s32.totalorder %s101, %s102
      %p111 = scmp.eq.s32.totalorder %s23, 0
      %p112 = por %p110, %p111
      %p113 = scmp.ne.s32.totalorder %s101, %s102
      %p114 = scmp.eq.s32.totalorder %s24, 1
      %p115 = por %p113, %p114
      %p117 = scmp.ne.s32.totalorder %s102, %s116
      %p118 = scmp.eq.s32.totalorder %s24, 0
      %p119 = por %p117, %p118
      %s121 = sadd.s32 %s120, 1
      %p124 = scmp.eq.s32.totalorder %s18, 1
      %p125 = scmp.ne.s32.totalorder %s120, %s122
      %p126 = scmp.eq.s32.totalorder %s18, 0
      %p127 = por %p125, %p126
      %p128 = scmp.ne.s32.totalorder %s120, %s122
      %p129 = scmp.eq.s32.totalorder %s23, 1
      %p130 = por %p128, %p129
      %p131 = scmp.ne.s32.totalorder %s122, %s123
      %p132 = scmp.eq.s32.totalorder %s23, 0
      %p133 = por %p131, %p132
      %p134 = scmp.ne.s32.totalorder %s122, %s123
      %p135 = scmp.eq.s32.totalorder %s24, 1
      %p136 = por %p134, %p135
      %p138 = scmp.ne.s32.totalorder %s123, %s137
      %p139 = scmp.eq.s32.totalorder %s24, 0
      %p140 = por %p138, %p139
      %s142 = sadd.s32 %s141, 1
      %p145 = scmp.eq.s32.totalorder %s18, 1
      %p146 = scmp.ne.s32.totalorder %s141, %s143
      %p147 = scmp.eq.s32.totalorder %s18, 0
      %p148 = por %p146, %p147
      %p149 = scmp.ne.s32.totalorder %s141, %s143
      %p150 = scmp.eq.s32.totalorder %s23, 1
      %p151 = por %p149, %p150
      %p152 = scmp.ne.s32.totalorder %s143, %s144
      %p153 = scmp.eq.s32.totalorder %s23, 0
      %p154 = por %p152, %p153
      %p155 = scmp.ne.s32.totalorder %s143, %s144
      %p156 = scmp.eq.s32.totalorder %s24, 1
      %p157 = por %p155, %p156
      %p159 = scmp.ne.s32.totalorder %s144, %s158
      %p160 = scmp.eq.s32.totalorder %s24, 0
      %p161 = por %p159, %p160
      %s163 = sadd.s32 %s162, 1
      %p166 = scmp.eq.s32.totalorder %s18, 1
      %p167 = scmp.ne.s32.totalorder %s162, %s164
      %p168 = scmp.eq.s32.totalorder %s18, 0
      %p169 = por %p167, %p168
      %p170 = scmp.ne.s32.totalorder %s162, %s164
      %p171 = scmp.eq.s32.totalorder %s23, 1
      %p172 = por %p170, %p171
      %p173 = scmp.ne.s32.totalorder %s164, %s165
      %p174 = scmp.eq.s32.totalorder %s23, 0
      %p175 = por %p173, %p174
      %p176 = scmp.ne.s32.totalorder %s164, %s165
      %p177 = scmp.eq.s32.totalorder %s24, 1
      %p178 = por %p176, %p177
      %p180 = scmp.ne.s32.totalorder %s165, %s179
      %p181 = scmp.eq.s32.totalorder %s24, 0
      %p182 = por %p180, %p181
      %s184 = sadd.s32 %s183, 1
      %p187 = scmp.eq.s32.totalorder %s18, 1
      %p188 = scmp.ne.s32.totalorder %s183, %s185
      %p189 = scmp.eq.s32.totalorder %s18, 0
      %p190 = por %p188, %p189
      %p191 = scmp.ne.s32.totalorder %s183, %s185
      %p192 = scmp.eq.s32.totalorder %s23, 1
      %p193 = por %p191, %p192
      %p194 = scmp.ne.s32.totalorder %s185, %s186
      %p195 = scmp.eq.s32.totalorder %s23, 0
      %p196 = por %p194, %p195
      %p197 = scmp.ne.s32.totalorder %s185, %s186
      %p198 = scmp.eq.s32.totalorder %s24, 1
      %p199 = por %p197, %p198
      %p201 = scmp.ne.s32.totalorder %s186, %s200
      %p202 = scmp.eq.s32.totalorder %s24, 0
      %p203 = por %p201, %p202
      %s204 = ssub.s32 %s18, %s25
      %p205 = scmp.eq.s32.totalorder %s204, 0
      %s207 = sadd.s32 %s206, 1
      %s208 = scalar_select %p205, %s206, %s207
      %p211 = pneg %p205
      %p212 = scmp.eq.s32.totalorder %s18, 1
      %p213 = por %p211, %p212
      %p214 = scmp.ne.s32.totalorder %s206, %s209
      %p215 = scmp.eq.s32.totalorder %s18, 0
      %p216 = por %p214, %p215
      %p217 = scmp.ne.s32.totalorder %s206, %s209
      %p218 = scmp.eq.s32.totalorder %s23, 1
      %p219 = por %p217, %p218
      %p220 = scmp.ne.s32.totalorder %s209, %s210
      %p221 = scmp.eq.s32.totalorder %s23, 0
      %p222 = por %p220, %p221
      %p223 = scmp.ne.s32.totalorder %s209, %s210
      %p224 = scmp.eq.s32.totalorder %s24, 1
      %p225 = por %p223, %p224
      %p227 = scmp.ne.s32.totalorder %s210, %s226
      %p228 = scmp.eq.s32.totalorder %s24, 0
      %p229 = por %p227, %p228
      %p230 = scmp.le.s32.totalorder 1, %s18
      %p231 = scmp.lt.s32.totalorder %s18, 3
      %p232 = pnand %p230, %p231
      %p233 = pneg %p232
      // Predicated region
      $region9: #{tpu_custom_call.1} parent=5 // pred_check
        _
      $region10: #{tpu_custom_call.1} parent=5 // pred_check_branch
        %235 = sbr.rel (%p232) target = $region12
      $region11: #{tpu_custom_call.1} parent=5 // pred_region
        %s236 = ssub.s32 %s18, 1
        // Predicated region
        $region13: #{tpu_custom_call.1} parent=11 // pred_check
          %p237 = pneg %p91
        $region14: #{tpu_custom_call.1} parent=11 // pred_check_branch
          %239 = sbr.rel (%p237) target = $region16
        $region15: #{tpu_custom_call.1} parent=11 // pred_region
          _
        $region16: #{tpu_custom_call.1} parent=11 // pred_fallthru
          _
        // Predicated region
        $region17: #{tpu_custom_call.1} parent=11 // pred_check
          %p240 = pneg %p112
        $region18: #{tpu_custom_call.1} parent=11 // pred_check_branch
          %242 = sbr.rel (%p240) target = $region20
        $region19: #{tpu_custom_call.1} parent=11 // pred_region
          _
        $region20: #{tpu_custom_call.1} parent=11 // pred_fallthru
          _
        // Predicated region
        $region21: #{tpu_custom_call.1} parent=11 // pred_check
          %p243 = pneg %p133
        $region22: #{tpu_custom_call.1} parent=11 // pred_check_branch
          %245 = sbr.rel (%p243) target = $region24
        $region23: #{tpu_custom_call.1} parent=11 // pred_region
          %s247 = ssub.s32 8192, 8192
          %248 = vsyncadd [#allocation3], %s247
          %s249 = sshll.u32 [#allocation2], 4
          %s250 = int_to_ptr.vmem [resolvable:$true] %s249
          %255 = dma.hbm_to_vmem [thread:$0]  %s4, 8192, %s250, [#allocation3], 256, 256, 16
        $region24: #{tpu_custom_call.1} parent=11 // pred_fallthru
          _
        // Predicated region
        $region25: #{tpu_custom_call.1} parent=11 // pred_check
          %p256 = pneg %p154
        $region26: #{tpu_custom_call.1} parent=11 // pred_check_branch
          %258 = sbr.rel (%p256) target = $region28
        $region27: #{tpu_custom_call.1} parent=11 // pred_region
          _
        $region28: #{tpu_custom_call.1} parent=11 // pred_fallthru
          _
        // Predicated region
        $region29: #{tpu_custom_call.1} parent=11 // pred_check
          %p259 = pneg %p175
        $region30: #{tpu_custom_call.1} parent=11 // pred_check_branch
          %261 = sbr.rel (%p259) target = $region32
        $region31: #{tpu_custom_call.1} parent=11 // pred_region
          _
        $region32: #{tpu_custom_call.1} parent=11 // pred_fallthru
          _
        // Predicated region
        $region33: #{tpu_custom_call.1} parent=11 // pred_check
          %p262 = pneg %p196
        $region34: #{tpu_custom_call.1} parent=11 // pred_check_branch
          %264 = sbr.rel (%p262) target = $region36
        $region35: #{tpu_custom_call.1} parent=11 // pred_region
          _
        $region36: #{tpu_custom_call.1} parent=11 // pred_fallthru
          _
      $region12: #{tpu_custom_call.1} parent=5 // pred_fallthru
        _
      %p265 = scmp.lt.s32.totalorder %s18, 2
      // Predicated region
      $region37: #{tpu_custom_call.1} parent=5 // pred_check
        %p266 = pneg %p265
      $region38: #{tpu_custom_call.1} parent=5 // pred_check_branch
        %268 = sbr.rel (%p266) target = $region40
      $region39: #{tpu_custom_call.1} parent=5 // pred_region
        // Predicated region
        $region41: #{tpu_custom_call.1} parent=39 // pred_check
          %p269 = pneg %p38
        $region42: #{tpu_custom_call.1} parent=39 // pred_check_branch
          %271 = sbr.rel (%p269) target = $region44
        $region43: #{tpu_custom_call.1} parent=39 // pred_region
          %p272 = scmp.lt.s32.totalorder %s18, 1
          %s273 = scalar_select %p272, %s18, 1
          %s274 = smul.addr %s273, 8
          %s275 = scalar_lea.vmem %s0, %s274
        $region44: #{tpu_custom_call.1} parent=39 // pred_fallthru
          _
        // Predicated region
        $region45: #{tpu_custom_call.1} parent=39 // pred_check
          %p276 = pneg %p64
        $region46: #{tpu_custom_call.1} parent=39 // pred_check_branch
          %278 = sbr.rel (%p276) target = $region48
        $region47: #{tpu_custom_call.1} parent=39 // pred_region
          %p279 = scmp.lt.s32.totalorder %s18, 1
          %s280 = scalar_select %p279, %s18, 1
          %s281 = smul.addr %s280, 8
          %s282 = scalar_lea.vmem %s1, %s281
        $region48: #{tpu_custom_call.1} parent=39 // pred_fallthru
          _
      $region40: #{tpu_custom_call.1} parent=5 // pred_fallthru
        _
      %p283 = scmp.le.s32.totalorder 1, %s18
      %p284 = scmp.lt.s32.totalorder %s18, 3
      %p285 = pnand %p283, %p284
      %p286 = pneg %p285
      // Predicated region
      $region49: #{tpu_custom_call.1} parent=5 // pred_check
        _
      $region50: #{tpu_custom_call.1} parent=5 // pred_check_branch
        %288 = sbr.rel (%p285) target = $region52
      $region51: #{tpu_custom_call.1} parent=5 // pred_region
        %s289 = ssub.s32 %s18, 1
        // Predicated region
        $region53: #{tpu_custom_call.1} parent=51 // pred_check
          %p290 = pneg %p133
        $region54: #{tpu_custom_call.1} parent=51 // pred_check_branch
          %292 = sbr.rel (%p290) target = $region56
        $region55: #{tpu_custom_call.1} parent=51 // pred_region
          %293 = dma.done [#allocation3], 8192
        $region56: #{tpu_custom_call.1} parent=51 // pred_fallthru
          _
        %p294 = scmp.lt.s32.totalorder %s23, 1
        %s295 = scalar_select %p294, %s23, 1
        %s296 = smul.addr %s295, 8
        %s297 = scalar_lea.vmem %s0, %s296
        %p298 = pneg %p44
        %p299 = pneg %p41
        %p300 = scmp.lt.s32.totalorder %s23, 1
        %s301 = scalar_select %p300, %s23, 1
        %s302 = smul.addr %s301, 8
        %s303 = scalar_lea.vmem %s1, %s302
        %p304 = pneg %p70
        %p305 = pneg %p67
        %p306 = pneg %p91
        %p307 = pneg %p88
        %p308 = pneg %p112
        %p309 = pneg %p109
        %p310 = pneg %p133
        %p311 = pneg %p130
        %p312 = pneg %p154
        %p313 = pneg %p151
        %p314 = pneg %p175
        %p315 = pneg %p172
        %p316 = pneg %p196
        %p317 = pneg %p193
        %p318 = pneg %p222
        %p319 = pneg %p219
        %s320 = sand.u32 %s209, 1
        %s321 = scalar_lea.sflag [#allocation4], %s320
        %s322 = sand.u32 %s209, 1
        %s323 = smul.addr %s322, 8
        %s324 = scalar_lea.vmem [#allocation5], %s323
        %p325 = scmp.lt.s32.totalorder %s23, 1
        %s326 = scalar_select %p325, %s23, 1
        %s327 = smul.addr %s326, 8
        %s328 = scalar_lea.vmem %s0, %s327
        %p329 = scmp.lt.s32.totalorder %s23, 1
        %s330 = scalar_select %p329, %s23, 1
        %s331 = smul.addr %s330, 8
        %s332 = scalar_lea.vmem %s1, %s331
        %v333 = vld [vmem:[%s328] sm:$0xff]
        %v334 = vld [vmem:[%s332] sm:$0xff]
        %v335 = vmul.f32 %v333, %v334
        %v336 = vld [vmem:[%s2] sm:$0xff]
        %v337 = vld [vmem:[%s2 + $0x8] sm:$0xff]
        %v338 = vld [vmem:[%s2 + $0x10] sm:$0xff]
        %v339 = vld [vmem:[%s2 + $0x18] sm:$0xff]
        %v340 = vld [vmem:[%s2 + $0x20] sm:$0xff]
        %v341 = vld [vmem:[%s2 + $0x28] sm:$0xff]
        %v342 = vld [vmem:[%s2 + $0x30] sm:$0xff]
        %v343 = vld [vmem:[%s2 + $0x38] sm:$0xff]
        %v344 = vld [vmem:[%s2 + $0x40] sm:$0xff]
        %v345 = vld [vmem:[%s2 + $0x48] sm:$0xff]
        %v346 = vld [vmem:[%s2 + $0x50] sm:$0xff]
        %v347 = vld [vmem:[%s2 + $0x58] sm:$0xff]
        %v348 = vld [vmem:[%s2 + $0x60] sm:$0xff]
        %v349 = vld [vmem:[%s2 + $0x68] sm:$0xff]
        %v350 = vld [vmem:[%s2 + $0x70] sm:$0xff]
        %v351 = vld [vmem:[%s2 + $0x78] sm:$0xff]
        %v352 = vld [vmem:[%s2 + $0x80] sm:$0xff]
        %v353 = vld [vmem:[%s2 + $0x88] sm:$0xff]
        %v354 = vld [vmem:[%s2 + $0x90] sm:$0xff]
        %v355 = vld [vmem:[%s2 + $0x98] sm:$0xff]
        %v356 = vld [vmem:[%s2 + $0xa0] sm:$0xff]
        %v357 = vld [vmem:[%s2 + $0xa8] sm:$0xff]
        %v358 = vld [vmem:[%s2 + $0xb0] sm:$0xff]
        %v359 = vld [vmem:[%s2 + $0xb8] sm:$0xff]
        %v360 = vld [vmem:[%s2 + $0xc0] sm:$0xff]
        %v361 = vld [vmem:[%s2 + $0xc8] sm:$0xff]
        %v362 = vld [vmem:[%s2 + $0xd0] sm:$0xff]
        %v363 = vld [vmem:[%s2 + $0xd8] sm:$0xff]
        %v364 = vld [vmem:[%s2 + $0xe0] sm:$0xff]
        %v365 = vld [vmem:[%s2 + $0xe8] sm:$0xff]
        %v366 = vld [vmem:[%s2 + $0xf0] sm:$0xff]
        %v367 = vld [vmem:[%s2 + $0xf8] sm:$0xff]
        %v368 = vld [vmem:[%s3] sm:$0x3]
        %v370 = vlaneseq
        %v371 = vshrl.u32 %v370, 7
        %v372 = vsub.s32 0, %v371
        %v373 = vrot.slane %v368, %v372
        %v374 = vlaneseq
        %v375 = vshrl.u32 %v374, 7
        %v376 = vsub.s32 1, %v375
        %v377 = vrot.slane %v368, %v376
        %380 = vmatprep.subr.mxu0 %v367
        %381 = vmatpush1.msra.mxu0 %v366
        %382 = vmatprep.subr.mxu0 %v365
        %383 = vmatpush1.msra.mxu0 %v364
        %384 = vmatprep.subr.mxu0 %v363
        %385 = vmatpush1.msra.mxu0 %v362
        %386 = vmatprep.subr.mxu0 %v361
        %387 = vmatpush1.msra.mxu0 %v360
        %388 = vmatprep.subr.mxu0 %v359
        %389 = vmatpush1.msra.mxu0 %v358
        %390 = vmatprep.subr.mxu0 %v357
        %391 = vmatpush1.msra.mxu0 %v356
        %392 = vmatprep.subr.mxu0 %v355
        %393 = vmatpush1.msra.mxu0 %v354
        %394 = vmatprep.subr.mxu0 %v353
        %395 = vmatpush1.msra.mxu0 %v352
        %396 = vmatprep.subr.mxu0 %v351
        %397 = vmatpush1.msra.mxu0 %v350
        %398 = vmatprep.subr.mxu0 %v349
        %399 = vmatpush1.msra.mxu0 %v348
        %400 = vmatprep.subr.mxu0 %v347
        %401 = vmatpush1.msra.mxu0 %v346
        %402 = vmatprep.subr.mxu0 %v345
        %403 = vmatpush1.msra.mxu0 %v344
        %404 = vmatprep.subr.mxu0 %v343
        %405 = vmatpush1.msra.mxu0 %v342
        %406 = vmatprep.subr.mxu0 %v341
        %407 = vmatpush1.msra.mxu0 %v340
        %408 = vmatprep.subr.mxu0 %v339
        %409 = vmatpush1.msra.mxu0 %v338
        %410 = vmatprep.subr.mxu0 %v337
        %411 = vmatpush1.msra.mxu0 %v336
        %412 = vmatprep.subr.mxu0 0.0
        %413 = vmatpush2.msra.mxu0 0.0
        %414 = vmatprep.subr.mxu0 0.0
        %415 = vmatpush2.msra.mxu0 0.0
        %416 = vmatprep.subr.mxu0 0.0
        %417 = vmatpush2.msra.mxu0 0.0
        %418 = vmatprep.subr.mxu0 0.0
        %419 = vmatpush2.msra.mxu0 0.0
        %420 = vmatprep.subr.mxu0 0.0
        %421 = vmatpush2.msra.mxu0 0.0
        %422 = vmatprep.subr.mxu0 0.0
        %423 = vmatpush2.msra.mxu0 0.0
        %424 = vmatprep.subr.mxu0 0.0
        %425 = vmatpush2.msra.mxu0 0.0
        %426 = vmatprep.subr.mxu0 0.0
        %427 = vmatpush2.msra.mxu0 0.0
        %428 = vmatprep.subr.mxu0 0.0
        %429 = vmatpush2.msra.mxu0 0.0
        %430 = vmatprep.subr.mxu0 0.0
        %431 = vmatpush2.msra.mxu0 0.0
        %432 = vmatprep.subr.mxu0 0.0
        %433 = vmatpush2.msra.mxu0 0.0
        %434 = vmatprep.subr.mxu0 0.0
        %435 = vmatpush2.msra.mxu0 0.0
        %436 = vmatprep.subr.mxu0 0.0
        %437 = vmatpush2.msra.mxu0 0.0
        %438 = vmatprep.subr.mxu0 0.0
        %439 = vmatpush2.msra.mxu0 0.0
        %440 = vmatprep.subr.mxu0 0.0
        %441 = vmatpush2.msra.mxu0 0.0
        %442 = vmatprep.subr.mxu0 0.0
        %443 = vmatpush2.msra.mxu0 0.0
        %444 = vmatprep.mubr.f32.mxu0 0.0
        %445 = vmatmul.mubr.f32.gmra.mxu0 %v335
        %v446 = vpop.f32.mrf.mxu0
        %v447 = vadd.f32 %v373, %v446
        %v448 = vpop.f32.mrf.mxu0
        %v449 = vadd.f32 %v377, %v448
        %450 = vdwg.mxu0
        %v451 = vmax.f32 %v447, 0.0
        %v452 = vmax.f32 %v449, 0.0
        %v453 = vld [vmem:[#allocation2] sm:$0xff]
        %v454 = vld [vmem:[#allocation2 + $0x8] sm:$0xff]
        %v455 = vld [vmem:[#allocation2 + $0x10] sm:$0xff]
        %v456 = vld [vmem:[#allocation2 + $0x18] sm:$0xff]
        %v457 = vld [vmem:[#allocation2 + $0x20] sm:$0xff]
        %v458 = vld [vmem:[#allocation2 + $0x28] sm:$0xff]
        %v459 = vld [vmem:[#allocation2 + $0x30] sm:$0xff]
        %v460 = vld [vmem:[#allocation2 + $0x38] sm:$0xff]
        %v461 = vld [vmem:[#allocation2 + $0x40] sm:$0xff]
        %v462 = vld [vmem:[#allocation2 + $0x48] sm:$0xff]
        %v463 = vld [vmem:[#allocation2 + $0x50] sm:$0xff]
        %v464 = vld [vmem:[#allocation2 + $0x58] sm:$0xff]
        %v465 = vld [vmem:[#allocation2 + $0x60] sm:$0xff]
        %v466 = vld [vmem:[#allocation2 + $0x68] sm:$0xff]
        %v467 = vld [vmem:[#allocation2 + $0x70] sm:$0xff]
        %v468 = vld [vmem:[#allocation2 + $0x78] sm:$0xff]
        %v469 = vld [vmem:[#allocation2 + $0x80] sm:$0xff]
        %v470 = vld [vmem:[#allocation2 + $0x88] sm:$0xff]
        %v471 = vld [vmem:[#allocation2 + $0x90] sm:$0xff]
        %v472 = vld [vmem:[#allocation2 + $0x98] sm:$0xff]
        %v473 = vld [vmem:[#allocation2 + $0xa0] sm:$0xff]
        %v474 = vld [vmem:[#allocation2 + $0xa8] sm:$0xff]
        %v475 = vld [vmem:[#allocation2 + $0xb0] sm:$0xff]
        %v476 = vld [vmem:[#allocation2 + $0xb8] sm:$0xff]
        %v477 = vld [vmem:[#allocation2 + $0xc0] sm:$0xff]
        %v478 = vld [vmem:[#allocation2 + $0xc8] sm:$0xff]
        %v479 = vld [vmem:[#allocation2 + $0xd0] sm:$0xff]
        %v480 = vld [vmem:[#allocation2 + $0xd8] sm:$0xff]
        %v481 = vld [vmem:[#allocation2 + $0xe0] sm:$0xff]
        %v482 = vld [vmem:[#allocation2 + $0xe8] sm:$0xff]
        %v483 = vld [vmem:[#allocation2 + $0xf0] sm:$0xff]
        %v484 = vld [vmem:[#allocation2 + $0xf8] sm:$0xff]
        %v485 = vld [vmem:[#allocation2 + $0x100] sm:$0xff]
        %v486 = vld [vmem:[#allocation2 + $0x108] sm:$0xff]
        %v487 = vld [vmem:[#allocation2 + $0x110] sm:$0xff]
        %v488 = vld [vmem:[#allocation2 + $0x118] sm:$0xff]
        %v489 = vld [vmem:[#allocation2 + $0x120] sm:$0xff]
        %v490 = vld [vmem:[#allocation2 + $0x128] sm:$0xff]
        %v491 = vld [vmem:[#allocation2 + $0x130] sm:$0xff]
        %v492 = vld [vmem:[#allocation2 + $0x138] sm:$0xff]
        %v493 = vld [vmem:[#allocation2 + $0x140] sm:$0xff]
        %v494 = vld [vmem:[#allocation2 + $0x148] sm:$0xff]
        %v495 = vld [vmem:[#allocation2 + $0x150] sm:$0xff]
        %v496 = vld [vmem:[#allocation2 + $0x158] sm:$0xff]
        %v497 = vld [vmem:[#allocation2 + $0x160] sm:$0xff]
        %v498 = vld [vmem:[#allocation2 + $0x168] sm:$0xff]
        %v499 = vld [vmem:[#allocation2 + $0x170] sm:$0xff]
        %v500 = vld [vmem:[#allocation2 + $0x178] sm:$0xff]
        %v501 = vld [vmem:[#allocation2 + $0x180] sm:$0xff]
        %v502 = vld [vmem:[#allocation2 + $0x188] sm:$0xff]
        %v503 = vld [vmem:[#allocation2 + $0x190] sm:$0xff]
        %v504 = vld [vmem:[#allocation2 + $0x198] sm:$0xff]
        %v505 = vld [vmem:[#allocation2 + $0x1a0] sm:$0xff]
        %v506 = vld [vmem:[#allocation2 + $0x1a8] sm:$0xff]
        %v507 = vld [vmem:[#allocation2 + $0x1b0] sm:$0xff]
        %v508 = vld [vmem:[#allocation2 + $0x1b8] sm:$0xff]
        %v509 = vld [vmem:[#allocation2 + $0x1c0] sm:$0xff]
        %v510 = vld [vmem:[#allocation2 + $0x1c8] sm:$0xff]
        %v511 = vld [vmem:[#allocation2 + $0x1d0] sm:$0xff]
        %v512 = vld [vmem:[#allocation2 + $0x1d8] sm:$0xff]
        %v513 = vld [vmem:[#allocation2 + $0x1e0] sm:$0xff]
        %v514 = vld [vmem:[#allocation2 + $0x1e8] sm:$0xff]
        %v515 = vld [vmem:[#allocation2 + $0x1f0] sm:$0xff]
        %v516 = vld [vmem:[#allocation2 + $0x1f8] sm:$0xff]
        %v517 = vld [vmem:[%s5] sm:$0x3]
        %v519 = vlaneseq
        %v520 = vshrl.u32 %v519, 7
        %v521 = vsub.s32 0, %v520
        %v522 = vrot.slane %v517, %v521
        %v523 = vlaneseq
        %v524 = vshrl.u32 %v523, 7
        %v525 = vsub.s32 1, %v524
        %v526 = vrot.slane %v517, %v525
        %529 = vmatprep.subr.mxu0 %v484
        %530 = vmatpush1.msra.mxu0 %v483
        %531 = vmatprep.subr.mxu0 %v482
        %532 = vmatpush1.msra.mxu0 %v481
        %533 = vmatprep.subr.mxu0 %v480
        %534 = vmatpush1.msra.mxu0 %v479
        %535 = vmatprep.subr.mxu0 %v478
        %536 = vmatpush1.msra.mxu0 %v477
        %537 = vmatprep.subr.mxu0 %v476
        %538 = vmatpush1.msra.mxu0 %v475
        %539 = vmatprep.subr.mxu0 %v474
        %540 = vmatpush1.msra.mxu0 %v473
        %541 = vmatprep.subr.mxu0 %v472
        %542 = vmatpush1.msra.mxu0 %v471
        %543 = vmatprep.subr.mxu0 %v470
        %544 = vmatpush1.msra.mxu0 %v469
        %545 = vmatprep.subr.mxu0 %v468
        %546 = vmatpush1.msra.mxu0 %v467
        %547 = vmatprep.subr.mxu0 %v466
        %548 = vmatpush1.msra.mxu0 %v465
        %549 = vmatprep.subr.mxu0 %v464
        %550 = vmatpush1.msra.mxu0 %v463
        %551 = vmatprep.subr.mxu0 %v462
        %552 = vmatpush1.msra.mxu0 %v461
        %553 = vmatprep.subr.mxu0 %v460
        %554 = vmatpush1.msra.mxu0 %v459
        %555 = vmatprep.subr.mxu0 %v458
        %556 = vmatpush1.msra.mxu0 %v457
        %557 = vmatprep.subr.mxu0 %v456
        %558 = vmatpush1.msra.mxu0 %v455
        %559 = vmatprep.subr.mxu0 %v454
        %560 = vmatpush1.msra.mxu0 %v453
        %561 = vmatprep.subr.mxu0 %v516
        %562 = vmatpush2.msra.mxu0 %v515
        %563 = vmatprep.subr.mxu0 %v514
        %564 = vmatpush2.msra.mxu0 %v513
        %565 = vmatprep.subr.mxu0 %v512
        %566 = vmatpush2.msra.mxu0 %v511
        %567 = vmatprep.subr.mxu0 %v510
        %568 = vmatpush2.msra.mxu0 %v509
        %569 = vmatprep.subr.mxu0 %v508
        %570 = vmatpush2.msra.mxu0 %v507
        %571 = vmatprep.subr.mxu0 %v506
        %572 = vmatpush2.msra.mxu0 %v505
        %573 = vmatprep.subr.mxu0 %v504
        %574 = vmatpush2.msra.mxu0 %v503
        %575 = vmatprep.subr.mxu0 %v502
        %576 = vmatpush2.msra.mxu0 %v501
        %577 = vmatprep.subr.mxu0 %v500
        %578 = vmatpush2.msra.mxu0 %v499
        %579 = vmatprep.subr.mxu0 %v498
        %580 = vmatpush2.msra.mxu0 %v497
        %581 = vmatprep.subr.mxu0 %v496
        %582 = vmatpush2.msra.mxu0 %v495
        %583 = vmatprep.subr.mxu0 %v494
        %584 = vmatpush2.msra.mxu0 %v493
        %585 = vmatprep.subr.mxu0 %v492
        %586 = vmatpush2.msra.mxu0 %v491
        %587 = vmatprep.subr.mxu0 %v490
        %588 = vmatpush2.msra.mxu0 %v489
        %589 = vmatprep.subr.mxu0 %v488
        %590 = vmatpush2.msra.mxu0 %v487
        %591 = vmatprep.subr.mxu0 %v486
        %592 = vmatpush2.msra.mxu0 %v485
        %593 = vmatprep.mubr.f32.mxu0 %v452
        %594 = vmatmul.mubr.f32.gmra.mxu0 %v451
        %v595 = vpop.f32.mrf.mxu0
        %v596 = vadd.f32 %v522, %v595
        %v597 = vpop.f32.mrf.mxu0
        %v598 = vadd.f32 %v526, %v597
        %599 = vdwg.mxu0
        %v600 = vmax.f32 %v596, 0.0
        %v601 = vmax.f32 %v598, 0.0
        %v602 = vld [vmem:[%s6] sm:$0xff]
        %v603 = vld [vmem:[%s6 + $0x8] sm:$0xff]
        %v604 = vld [vmem:[%s6 + $0x10] sm:$0xff]
        %v605 = vld [vmem:[%s6 + $0x18] sm:$0xff]
        %v606 = vld [vmem:[%s6 + $0x20] sm:$0xff]
        %v607 = vld [vmem:[%s6 + $0x28] sm:$0xff]
        %v608 = vld [vmem:[%s6 + $0x30] sm:$0xff]
        %v609 = vld [vmem:[%s6 + $0x38] sm:$0xff]
        %v610 = vld [vmem:[%s6 + $0x40] sm:$0xff]
        %v611 = vld [vmem:[%s6 + $0x48] sm:$0xff]
        %v612 = vld [vmem:[%s6 + $0x50] sm:$0xff]
        %v613 = vld [vmem:[%s6 + $0x58] sm:$0xff]
        %v614 = vld [vmem:[%s6 + $0x60] sm:$0xff]
        %v615 = vld [vmem:[%s6 + $0x68] sm:$0xff]
        %v616 = vld [vmem:[%s6 + $0x70] sm:$0xff]
        %v617 = vld [vmem:[%s6 + $0x78] sm:$0xff]
        %v618 = vld [vmem:[%s6 + $0x80] sm:$0xff]
        %v619 = vld [vmem:[%s6 + $0x88] sm:$0xff]
        %v620 = vld [vmem:[%s6 + $0x90] sm:$0xff]
        %v621 = vld [vmem:[%s6 + $0x98] sm:$0xff]
        %v622 = vld [vmem:[%s6 + $0xa0] sm:$0xff]
        %v623 = vld [vmem:[%s6 + $0xa8] sm:$0xff]
        %v624 = vld [vmem:[%s6 + $0xb0] sm:$0xff]
        %v625 = vld [vmem:[%s6 + $0xb8] sm:$0xff]
        %v626 = vld [vmem:[%s6 + $0xc0] sm:$0xff]
        %v627 = vld [vmem:[%s6 + $0xc8] sm:$0xff]
        %v628 = vld [vmem:[%s6 + $0xd0] sm:$0xff]
        %v629 = vld [vmem:[%s6 + $0xd8] sm:$0xff]
        %v630 = vld [vmem:[%s6 + $0xe0] sm:$0xff]
        %v631 = vld [vmem:[%s6 + $0xe8] sm:$0xff]
        %v632 = vld [vmem:[%s6 + $0xf0] sm:$0xff]
        %v633 = vld [vmem:[%s6 + $0xf8] sm:$0xff]
        %v634 = vld [vmem:[%s7] sm:$0x1]
        %v636 = vlaneseq
        %v637 = vshrl.u32 %v636, 7
        %v638 = vsub.s32 0, %v637
        %v639 = vrot.slane %v634, %v638
        %641 = vmatprep.subr.mxu0 0.0
        %642 = vmatpush1.msra.mxu0 %v617
        %643 = vmatprep.subr.mxu0 0.0
        %644 = vmatpush1.msra.mxu0 %v616
        %645 = vmatprep.subr.mxu0 0.0
        %646 = vmatpush1.msra.mxu0 %v615
        %647 = vmatprep.subr.mxu0 0.0
        %648 = vmatpush1.msra.mxu0 %v614
        %649 = vmatprep.subr.mxu0 0.0
        %650 = vmatpush1.msra.mxu0 %v613
        %651 = vmatprep.subr.mxu0 0.0
        %652 = vmatpush1.msra.mxu0 %v612
        %653 = vmatprep.subr.mxu0 0.0
        %654 = vmatpush1.msra.mxu0 %v611
        %655 = vmatprep.subr.mxu0 0.0
        %656 = vmatpush1.msra.mxu0 %v610
        %657 = vmatprep.subr.mxu0 0.0
        %658 = vmatpush1.msra.mxu0 %v609
        %659 = vmatprep.subr.mxu0 0.0
        %660 = vmatpush1.msra.mxu0 %v608
        %661 = vmatprep.subr.mxu0 0.0
        %662 = vmatpush1.msra.mxu0 %v607
        %663 = vmatprep.subr.mxu0 0.0
        %664 = vmatpush1.msra.mxu0 %v606
        %665 = vmatprep.subr.mxu0 0.0
        %666 = vmatpush1.msra.mxu0 %v605
        %667 = vmatprep.subr.mxu0 0.0
        %668 = vmatpush1.msra.mxu0 %v604
        %669 = vmatprep.subr.mxu0 0.0
        %670 = vmatpush1.msra.mxu0 %v603
        %671 = vmatprep.subr.mxu0 0.0
        %672 = vmatpush1.msra.mxu0 %v602
        %673 = vmatprep.subr.mxu0 0.0
        %674 = vmatpush2.msra.mxu0 %v633
        %675 = vmatprep.subr.mxu0 0.0
        %676 = vmatpush2.msra.mxu0 %v632
        %677 = vmatprep.subr.mxu0 0.0
        %678 = vmatpush2.msra.mxu0 %v631
        %679 = vmatprep.subr.mxu0 0.0
        %680 = vmatpush2.msra.mxu0 %v630
        %681 = vmatprep.subr.mxu0 0.0
        %682 = vmatpush2.msra.mxu0 %v629
        %683 = vmatprep.subr.mxu0 0.0
        %684 = vmatpush2.msra.mxu0 %v628
        %685 = vmatprep.subr.mxu0 0.0
        %686 = vmatpush2.msra.mxu0 %v627
        %687 = vmatprep.subr.mxu0 0.0
        %688 = vmatpush2.msra.mxu0 %v626
        %689 = vmatprep.subr.mxu0 0.0
        %690 = vmatpush2.msra.mxu0 %v625
        %691 = vmatprep.subr.mxu0 0.0
        %692 = vmatpush2.msra.mxu0 %v624
        %693 = vmatprep.subr.mxu0 0.0
        %694 = vmatpush2.msra.mxu0 %v623
        %695 = vmatprep.subr.mxu0 0.0
        %696 = vmatpush2.msra.mxu0 %v622
        %697 = vmatprep.subr.mxu0 0.0
        %698 = vmatpush2.msra.mxu0 %v621
        %699 = vmatprep.subr.mxu0 0.0
        %700 = vmatpush2.msra.mxu0 %v620
        %701 = vmatprep.subr.mxu0 0.0
        %702 = vmatpush2.msra.mxu0 %v619
        %703 = vmatprep.subr.mxu0 0.0
        %704 = vmatpush2.msra.mxu0 %v618
        %705 = vmatprep.mubr.f32.mxu0 %v601
        %706 = vmatmul.mubr.f32.gmra.mxu0 %v600
        %v707 = vpop.f32.mrf.mxu0
        %v708 = vadd.f32 %v639, %v707
        %v709 = vpop.f32.mrf.mxu0
        %710 = vdwg.mxu0
        %v711 = vxor.u32 %v708, 2147483648
        %v712 = vmul.f32 %v711, 1.442695
        %v713 = vpow.pop %v712
        %v714 = vadd.f32 %v713, 1.0
        %v715 = vrcp.pop %v714
        %v716 = vmul.f32 1.0, %v715
        %vm717 = vcmask 523264
        %718 = vst.msk [vmem:[%s324] sm:$0xff] %vm717, %v716
        %s719 = sand.u32 %s209, 1
        %s720 = scalar_lea.sflag [#allocation4], %s719
        %s721 = sand.u32 %s209, 1
        %s722 = smul.addr %s721, 8
        %s723 = scalar_lea.vmem [#allocation5], %s722
        // Predicated region
        $region57: #{tpu_custom_call.1} parent=51 // pred_check
          %p724 = pneg %p219
        $region58: #{tpu_custom_call.1} parent=51 // pred_check_branch
          %726 = sbr.rel (%p724) target = $region60
        $region59: #{tpu_custom_call.1} parent=51 // pred_region
          %s728 = ssub.s32 128, 128
          %729 = vsyncadd %s720, %s728
          %s730 = smul.addr %s23, 128
          %s731 = scalar_lea.hbm %s8, %s730
          %s733 = sshll.u32 %s723, 4
          %s734 = int_to_ptr.vmem [resolvable:$true] %s733
          %736 = dma.vmem_to_hbm [thread:$0]  %s734, 128, %s731, %s720
        $region60: #{tpu_custom_call.1} parent=51 // pred_fallthru
          _
      $region52: #{tpu_custom_call.1} parent=5 // pred_fallthru
        _
      %p737 = scmp.le.s32.totalorder 2, %s18
      // Predicated region
      $region61: #{tpu_custom_call.1} parent=5 // pred_check
        %p738 = pneg %p737
      $region62: #{tpu_custom_call.1} parent=5 // pred_check_branch
        %740 = sbr.rel (%p738) target = $region64
      $region63: #{tpu_custom_call.1} parent=5 // pred_region
        %s741 = ssub.s32 %s18, 2
        // Predicated region
        $region65: #{tpu_custom_call.1} parent=63 // pred_check
          %p742 = pneg %p225
        $region66: #{tpu_custom_call.1} parent=63 // pred_check_branch
          %744 = sbr.rel (%p742) target = $region68
        $region67: #{tpu_custom_call.1} parent=63 // pred_region
          %s745 = sand.u32 %s210, 1
          %s746 = scalar_lea.sflag [#allocation4], %s745
          %s747 = sand.u32 %s210, 1
          %s748 = smul.addr %s747, 8
          %s749 = scalar_lea.vmem [#allocation5], %s748
          %750 = dma.done %s746, 128
        $region68: #{tpu_custom_call.1} parent=63 // pred_fallthru
          _
      $region64: #{tpu_custom_call.1} parent=5 // pred_fallthru
        _
    $region6: #{tpu_custom_call.1} parent=1 // loop_footer
      %s22 = sadd.s32 1, %s18
    $region7: #{tpu_custom_call.1} parent=1 // loop_footer_branch
      %17 = sbr.rel target = $region3
    $region8: #{tpu_custom_call.1} parent=1 // loop_exit
      _
    %751 = vsyncpa [#allocation3], 1
    %s752 = scalar_lea.sflag [#allocation3], 1
    %753 = vsyncpa %s752, 1
    %754 = vsyncpa [#allocation4], 1
    %s755 = scalar_lea.sflag [#allocation4], 1
    %756 = vsyncpa %s755, 1

</llo_original>
